<compile_context>
chip_gen: v7x
topology: tpu7x:2x2x1
jax: 0.10.0
libtpu: 0.0.40
codegen_flags: <defaults>
</compile_context>

<pallas_src>
import jax
import jax.numpy as jnp
from jax.experimental import pallas as pl
from jax.experimental.pallas import tpu as pltpu

_LANE = 128     # lane width (last dim)
_SUBLANE = 8    # f32 sublane packing (second-to-last dim)


def _round_up(n, m):
    return ((n + m - 1) // m) * m


def expert_kernel(x_ref, w_ref, b_ref, o_ref):
    # Cast activations to the weight dtype (bf16) on the VPU, run the matmul
    # on the MXU with f32 accumulate, then do the bias + ReLU epilogue in f32.
    x = x_ref[...].astype(w_ref.dtype)
    y = jnp.dot(x, w_ref[...], preferred_element_type=jnp.float32)
    o_ref[...] = jnp.maximum(y + b_ref[...], 0.0).astype(o_ref.dtype)


def prepare_expert_params(field_centers, weights, biases,
                          *, lane_multiple=_LANE, param_dtype=jnp.bfloat16):
    """One-time parameter prep (call at module/parameter-load time, NOT per forward).

    field_centers: list of (D_in,) f32
    weights:       list of (D_out_e, D_in) f32   (PyTorch nn.Linear layout)
    biases:        list of (D_out_e,) f32

    Returns:
      w_packed: (D_in, Np) param_dtype  -- experts stacked along N, lane-padded
      b_packed: (1, Np) f32             -- folded biases (b - c @ Wt), lane-padded
      n_real:   total un-padded output width (sum of D_out_e)
    """
    assert len(field_centers) == len(weights) == len(biases)
    w_cols, b_cols = [], []
    for c, w, b in zip(field_centers, weights, biases):
        w_t = jnp.asarray(w, jnp.float32).T                        # (D_in, D_out_e)
        c = jnp.asarray(c, jnp.float32)
        b_eff = jnp.asarray(b, jnp.float32) - c @ w_t              # fold center (f32)
        w_cols.append(w_t)
        b_cols.append(b_eff)
    w_stacked = jnp.concatenate(w_cols, axis=1)                    # (D_in, N)
    b_stacked = jnp.concatenate(b_cols, axis=0)                    # (N,)
    n_real = int(w_stacked.shape[1])
    n_pad = _round_up(max(n_real, 1), lane_multiple)
    # Zero padding => padded columns compute relu(0 + 0) == 0.
    w_packed = jnp.pad(w_stacked, ((0, 0), (0, n_pad - n_real))).astype(param_dtype)
    b_packed = jnp.pad(b_stacked, (0, n_pad - n_real)).reshape(1, n_pad).astype(jnp.float32)
    return w_packed, b_packed, n_real


def expert_forward(semantic_vec, w_packed, b_packed, *, block_b=128):
    """relu(semantic_vec @ w_packed + b_packed), gridded over batch tiles.

    semantic_vec: (B, D_in) f32
    w_packed:     (D_in, Np) bf16  (from prepare_expert_params)
    b_packed:     (1, Np) f32      (from prepare_expert_params)
    returns:      (B, Np) f32 padded slab (slice per-expert columns downstream)
    """
    B, D_in = semantic_vec.shape
    d_in_w, n_pad = w_packed.shape
    assert d_in_w == D_in and n_pad % _LANE == 0

    block_b = min(block_b, _round_up(B, _SUBLANE))
    grid_b = pl.cdiv(B, block_b)

    itemsize_w = jnp.dtype(w_packed.dtype).itemsize
    # Double-buffered x/out tiles + resident weights/bias, with headroom;
    # clamp to fit v7x's 32 MiB scoped VMEM default.
    vmem_bytes = 2 * (block_b * D_in * 4 + block_b * n_pad * 4
                      + D_in * n_pad * itemsize_w + n_pad * 4)
    vmem_limit = min(int(1.5 * vmem_bytes) + (4 << 20), 32 << 20)

    flops = 2 * B * D_in * n_pad
    bytes_accessed = (B * D_in * 4 + D_in * n_pad * itemsize_w
                      + n_pad * 4 + B * n_pad * 4)

    return pl.pallas_call(
        expert_kernel,
        out_shape=jax.ShapeDtypeStruct((B, n_pad), jnp.float32),
        grid_spec=pltpu.PrefetchScalarGridSpec(
            num_scalar_prefetch=0,
            grid=(grid_b,),
            in_specs=[
                pl.BlockSpec((block_b, D_in), lambda i: (i, 0)),   # x batch tile
                pl.BlockSpec((D_in, n_pad), lambda i: (0, 0)),     # W resident
                pl.BlockSpec((1, n_pad), lambda i: (0, 0)),        # bias resident
            ],
            out_specs=pl.BlockSpec((block_b, n_pad), lambda i: (i, 0)),
        ),
        compiler_params=pltpu.CompilerParams(
            dimension_semantics=("parallel",),     # 2 TCs on v7x
            vmem_limit_bytes=vmem_limit,
        ),
        cost_estimate=pl.CostEstimate(
            flops=flops, transcendentals=0, bytes_accessed=bytes_accessed),
    )(semantic_vec, w_packed, b_packed)


if __name__ == "__main__":
    key = jax.random.PRNGKey(0)

    # TODO(synk): K (= D_in) stays 32 as the module defines it; a fused producer
    # giving K >= 128 would further raise MXU utilization but is out of scope.
    B, D_in, D_out, E = 256, 32, 32, 8    # 8 experts stacked -> N = 256 lanes

    k_x, k_p = jax.random.split(key)
    semantic_vec = jax.random.normal(k_x, (B, D_in), dtype=jnp.float32)

    # Deterministic per-expert params (PyTorch-style uniform(+-1/sqrt(D_in))).
    bound = 1.0 / (D_in ** 0.5)
    centers, weights, biases = [], [], []
    pkeys = jax.random.split(k_p, 3 * E)
    for e in range(E):
        kc, kw, kb = pkeys[3 * e], pkeys[3 * e + 1], pkeys[3 * e + 2]
        centers.append(jax.random.normal(kc, (D_in,), dtype=jnp.float32))
        weights.append(jax.random.uniform(kw, (D_out, D_in), jnp.float32, -bound, bound))
        biases.append(jax.random.uniform(kb, (D_out,), jnp.float32, -bound, bound))

    # ---- multi-expert stacked call (the production path) ----
    w_packed, b_packed, n_real = prepare_expert_params(centers, weights, biases)
    out = expert_forward(semantic_vec, w_packed, b_packed)
    out = jax.block_until_ready(out)
    assert out.shape == (B, w_packed.shape[1]) and n_real == E * D_out

    for e in range(E):
        ref_e = jnp.maximum((semantic_vec - centers[e]) @ weights[e].T + biases[e], 0.0)
        got_e = out[:, e * D_out:(e + 1) * D_out]
        # bf16 weights/activations with f32 accumulate -> loosened tolerance.
        assert jnp.allclose(got_e, ref_e, atol=2e-2, rtol=2e-2), f"expert {e} mismatch"

    # ---- single ExpertModule call (spec fidelity at the original tiny shape) ----
    w1, b1, n1 = prepare_expert_params(centers[:1], weights[:1], biases[:1])
    x_small = semantic_vec[:8]
    out1 = jax.block_until_ready(expert_forward(x_small, w1, b1))
    ref1 = jnp.maximum((x_small - centers[0]) @ weights[0].T + biases[0], 0.0)
    assert jnp.allclose(out1[:, :D_out], ref1, atol=2e-2, rtol=2e-2)
    assert jnp.all(out1[:, D_out:] == 0.0)   # lane padding stays exactly zero

    print("KERNEL_OK")
</pallas_src>

<mosaic_0001>
module attributes {stable_mosaic.version = 11 : i64} {
  func.func @expert_kernel(%arg0: i32, %arg1: memref<128x32xf32, #tpu.memory_space<vmem>>, %arg2: memref<32x256xbf16, #tpu.memory_space<vmem>>, %arg3: memref<1x256xf32, #tpu.memory_space<vmem>>, %arg4: memref<128x256xf32, #tpu.memory_space<vmem>>) attributes {dimension_semantics = [#tpu.dimension_semantics<parallel>], iteration_bounds = array<i64: 2>, scalar_prefetch = 0 : i64, scratch_operands = 0 : i64, tpu.core_type = #tpu.core_type<tc>, window_params = [{transform_indices = @transform_0, window_bounds = array<i64: 128, 32>}, {pipeline_mode = #tpu.pipeline_mode<synchronous>, transform_indices = @transform_1, window_bounds = array<i64: 32, 256>}, {pipeline_mode = #tpu.pipeline_mode<synchronous>, transform_indices = @transform_2, window_bounds = array<i64: 1, 256>}, {transform_indices = @transform_3, window_bounds = array<i64: 128, 256>}]} {
    %c0 = arith.constant 0 : index
    %c0_0 = arith.constant 0 : index
    %0 = vector.load %arg1[%c0, %c0_0] : memref<128x32xf32, #tpu.memory_space<vmem>>, vector<128x32xf32>
    %1 = arith.truncf %0 : vector<128x32xf32> to vector<128x32xbf16>
    %c0_1 = arith.constant 0 : index
    %c0_2 = arith.constant 0 : index
    %2 = vector.load %arg2[%c0_1, %c0_2] : memref<32x256xbf16, #tpu.memory_space<vmem>>, vector<32x256xbf16>
    %cst = arith.constant dense<0.000000e+00> : vector<128x256xf32>
    %3 = tpu.matmul %1, %2, %cst {dimension_numbers = #tpu.dot_dimension_numbers<[1], [0], [0], [1], [0, 0, 1, 1], [], []>} : vector<128x32xbf16>, vector<32x256xbf16>, vector<128x256xf32> -> vector<128x256xf32>
    %c0_3 = arith.constant 0 : index
    %c0_4 = arith.constant 0 : index
    %4 = vector.load %arg3[%c0_3, %c0_4] : memref<1x256xf32, #tpu.memory_space<vmem>>, vector<1x256xf32>
    %5 = vector.broadcast %4 : vector<1x256xf32> to vector<128x256xf32>
    %6 = arith.addf %3, %5 : vector<128x256xf32>
    %cst_5 = arith.constant 0.000000e+00 : f32
    %7 = vector.broadcast %cst_5 : f32 to vector<128x256xf32>
    %8 = arith.maximumf %6, %7 : vector<128x256xf32>
    %c0_6 = arith.constant 0 : index
    %c0_7 = arith.constant 0 : index
    %9 = vector.load %arg4[%c0_6, %c0_7] : memref<128x256xf32, #tpu.memory_space<vmem>>, vector<128x256xf32>
    tpu.vector_store %arg4[%c0_6, %c0_7], %8 {strides = array<i32>} : memref<128x256xf32, #tpu.memory_space<vmem>>, vector<128x256xf32>,
    return
  }
  func.func @transform_0(%arg0: i32) -> (i32, i32) {
    %c0_i32 = arith.constant 0 : i32
    %c0_i32_0 = arith.constant 0 : i32
    return %arg0, %c0_i32 : i32, i32
  }
  func.func @transform_1(%arg0: i32) -> (i32, i32) {
    %c0_i32 = arith.constant 0 : i32
    %c0_i32_0 = arith.constant 0 : i32
    %c0_i32_1 = arith.constant 0 : i32
    return %c0_i32, %c0_i32_0 : i32, i32
  }
  func.func @transform_2(%arg0: i32) -> (i32, i32) {
    %c0_i32 = arith.constant 0 : i32
    %c0_i32_0 = arith.constant 0 : i32
    %c0_i32_1 = arith.constant 0 : i32
    return %c0_i32, %c0_i32_0 : i32, i32
  }
  func.func @transform_3(%arg0: i32) -> (i32, i32) {
    %c0_i32 = arith.constant 0 : i32
    %c0_i32_0 = arith.constant 0 : i32
    return %arg0, %c0_i32 : i32, i32
  }
}

</mosaic_0001>

<llo_original>
// kernel: tpu_custom_call.1
$region0: #{tpu_custom_call.1}
  #allocation0 [shape = 'u32[]', space=smem, size = 0x4, offset = 0x4, fixed_abs, tag = 'smem constant byte address 0x4 - core index']
  #allocation1 [shape = 'u32[144,128]{1,0:T(1,128)}', space=vmem, size = 0x12000, scoped, tag = 'internal scratch']
  %s0 = inlined_call_operand.vmem [shape: f32[256,32], index: 0, kind: input, shape index: {}]
  %s1 = inlined_call_operand.vmem [shape: bf16[32,256], index: 1, kind: input, shape index: {}]
  %s2 = inlined_call_operand.vmem [shape: f32[1,256], index: 2, kind: input, shape index: {}]
  %s3 = inlined_call_operand.hbm [shape: f32[256,256], index: 3, kind: output, shape index: {}]
  %s4 = sld [smem:[#allocation0]]
  $region45: #{tpu_custom_call.1} parent=0
    _
  %s6 = ssub.s32 1, %s4
  %s7 = scalar_select 0, %s6, %s4
  $region1: #{tpu_custom_call.1} parent=0
    #allocation2 [shape = 'u8[262144]{0}', space=vmem, size = 0x40000, scoped, tag = 'output window, operand 0']
    #allocation3 [shape = 's32[2]{0}', space=sflag, size = 0x8, scoped, tag = 'scoped memory for tpu_custom_call.1']
    %8 = vsyncpa [#allocation3], 0
    %s9 = scalar_lea.sflag [#allocation3], 1
    %10 = vsyncpa %s9, 0
    loop: start=0, step=1, limit=4
    $region2: #{tpu_custom_call.1} parent=1 // loop_pre_header
      _
    $region3: #{tpu_custom_call.1} parent=1 // loop_header
      %s12 = sphi 0, %s16
      %p13 = scmp.ge.s32.totalorder %s12, 4
      %s22 = sphi 0, %s24
      %s25 = sphi 0, %s22
      %s26 = sphi 0, %s25
      %s42 = sphi 0, %s26
      %s46 = sphi 0, %s46
      %s48 = sphi 0, %s46
      %s49 = sphi 0, %s48
      %s63 = sphi 0, %s49
      %s67 = sphi 0, %s67
      %s69 = sphi 0, %s67
      %s70 = sphi 0, %s69
      %s84 = sphi 0, %s70
      %s90 = sphi 0, %s92
      %s93 = sphi 0, %s90
      %s94 = sphi 0, %s93
      %s110 = sphi 0, %s94
    $region4: #{tpu_custom_call.1} parent=1 // loop_header_branch
      %15 = sbr.rel (%p13) target = $region8
    $region5: #{tpu_custom_call.1} parent=1 // loop_body
      %s17 = ssub.s32 %s12, 1
      %s18 = ssub.s32 %s12, 2
      %s19 = sadd.s32 %s12, 1
      %s20 = ssub.s32 %s12, %s19
      %p21 = scmp.eq.s32.totalorder %s20, 0
      %s23 = sadd.s32 %s22, 1
      %s24 = scalar_select %p21, %s22, %s23
      %p27 = pneg %p21
      %p28 = scmp.eq.s32.totalorder %s12, 1
      %p29 = por %p27, %p28
      %p30 = scmp.ne.s32.totalorder %s22, %s25
      %p31 = scmp.eq.s32.totalorder %s12, 0
      %p32 = por %p30, %p31
      %p33 = scmp.ne.s32.totalorder %s22, %s25
      %p34 = scmp.eq.s32.totalorder %s17, 1
      %p35 = por %p33, %p34
      %p36 = scmp.ne.s32.totalorder %s25, %s26
      %p37 = scmp.eq.s32.totalorder %s17, 0
      %p38 = por %p36, %p37
      %p39 = scmp.ne.s32.totalorder %s25, %s26
      %p40 = scmp.eq.s32.totalorder %s18, 1
      %p41 = por %p39, %p40
      %p43 = scmp.ne.s32.totalorder %s26, %s42
      %p44 = scmp.eq.s32.totalorder %s18, 0
      %p45 = por %p43, %p44
      %s47 = sadd.s32 %s46, 1
      %p50 = scmp.eq.s32.totalorder %s12, 1
      %p51 = scmp.ne.s32.totalorder %s46, %s48
      %p52 = scmp.eq.s32.totalorder %s12, 0
      %p53 = por %p51, %p52
      %p54 = scmp.ne.s32.totalorder %s46, %s48
      %p55 = scmp.eq.s32.totalorder %s17, 1
      %p56 = por %p54, %p55
      %p57 = scmp.ne.s32.totalorder %s48, %s49
      %p58 = scmp.eq.s32.totalorder %s17, 0
      %p59 = por %p57, %p58
      %p60 = scmp.ne.s32.totalorder %s48, %s49
      %p61 = scmp.eq.s32.totalorder %s18, 1
      %p62 = por %p60, %p61
      %p64 = scmp.ne.s32.totalorder %s49, %s63
      %p65 = scmp.eq.s32.totalorder %s18, 0
      %p66 = por %p64, %p65
      %s68 = sadd.s32 %s67, 1
      %p71 = scmp.eq.s32.totalorder %s12, 1
      %p72 = scmp.ne.s32.totalorder %s67, %s69
      %p73 = scmp.eq.s32.totalorder %s12, 0
      %p74 = por %p72, %p73
      %p75 = scmp.ne.s32.totalorder %s67, %s69
      %p76 = scmp.eq.s32.totalorder %s17, 1
      %p77 = por %p75, %p76
      %p78 = scmp.ne.s32.totalorder %s69, %s70
      %p79 = scmp.eq.s32.totalorder %s17, 0
      %p80 = por %p78, %p79
      %p81 = scmp.ne.s32.totalorder %s69, %s70
      %p82 = scmp.eq.s32.totalorder %s18, 1
      %p83 = por %p81, %p82
      %p85 = scmp.ne.s32.totalorder %s70, %s84
      %p86 = scmp.eq.s32.totalorder %s18, 0
      %p87 = por %p85, %p86
      %s88 = ssub.s32 %s12, %s19
      %p89 = scmp.eq.s32.totalorder %s88, 0
      %s91 = sadd.s32 %s90, 1
      %s92 = scalar_select %p89, %s90, %s91
      %p95 = pneg %p89
      %p96 = scmp.eq.s32.totalorder %s12, 1
      %p97 = por %p95, %p96
      %p98 = scmp.ne.s32.totalorder %s90, %s93
      %p99 = scmp.eq.s32.totalorder %s12, 0
      %p100 = por %p98, %p99
      %p101 = scmp.ne.s32.totalorder %s90, %s93
      %p102 = scmp.eq.s32.totalorder %s17, 1
      %p103 = por %p101, %p102
      %p104 = scmp.ne.s32.totalorder %s93, %s94
      %p105 = scmp.eq.s32.totalorder %s17, 0
      %p106 = por %p104, %p105
      %p107 = scmp.ne.s32.totalorder %s93, %s94
      %p108 = scmp.eq.s32.totalorder %s18, 1
      %p109 = por %p107, %p108
      %p111 = scmp.ne.s32.totalorder %s94, %s110
      %p112 = scmp.eq.s32.totalorder %s18, 0
      %p113 = por %p111, %p112
      %p114 = scmp.le.s32.totalorder 1, %s12
      %p115 = scmp.lt.s32.totalorder %s12, 3
      %p116 = pnand %p114, %p115
      %p117 = pneg %p116
      // Predicated region
      $region9: #{tpu_custom_call.1} parent=5 // pred_check
        _
      $region10: #{tpu_custom_call.1} parent=5 // pred_check_branch
        %119 = sbr.rel (%p116) target = $region12
      $region11: #{tpu_custom_call.1} parent=5 // pred_region
        %s120 = ssub.s32 %s12, 1
        // Predicated region
        $region13: #{tpu_custom_call.1} parent=11 // pred_check
          %p121 = pneg %p59
        $region14: #{tpu_custom_call.1} parent=11 // pred_check_branch
          %123 = sbr.rel (%p121) target = $region16
        $region15: #{tpu_custom_call.1} parent=11 // pred_region
          _
        $region16: #{tpu_custom_call.1} parent=11 // pred_fallthru
          _
        // Predicated region
        $region17: #{tpu_custom_call.1} parent=11 // pred_check
          %p124 = pneg %p80
        $region18: #{tpu_custom_call.1} parent=11 // pred_check_branch
          %126 = sbr.rel (%p124) target = $region20
        $region19: #{tpu_custom_call.1} parent=11 // pred_region
          _
        $region20: #{tpu_custom_call.1} parent=11 // pred_fallthru
          _
      $region12: #{tpu_custom_call.1} parent=5 // pred_fallthru
        _
      %p127 = scmp.lt.s32.totalorder %s12, 2
      // Predicated region
      $region21: #{tpu_custom_call.1} parent=5 // pred_check
        %p128 = pneg %p127
      $region22: #{tpu_custom_call.1} parent=5 // pred_check_branch
        %130 = sbr.rel (%p128) target = $region24
      $region23: #{tpu_custom_call.1} parent=5 // pred_region
        // Predicated region
        $region25: #{tpu_custom_call.1} parent=23 // pred_check
          %p131 = pneg %p32
        $region26: #{tpu_custom_call.1} parent=23 // pred_check_branch
          %133 = sbr.rel (%p131) target = $region28
        $region27: #{tpu_custom_call.1} parent=23 // pred_region
          %s134 = smul.u32 16, %s12
          %p135 = scmp.lt.s32.totalorder %s134, 31
          %s136 = scalar_select %p135, %s134, 31
          %s137 = smul.addr %s136, 8
          %s138 = scalar_lea.vmem %s0, %s137
          %s139 = smul.u32 16, %s12
        $region28: #{tpu_custom_call.1} parent=23 // pred_fallthru
          _
      $region24: #{tpu_custom_call.1} parent=5 // pred_fallthru
        _
      %p140 = scmp.le.s32.totalorder 1, %s12
      %p141 = scmp.lt.s32.totalorder %s12, 3
      %p142 = pnand %p140, %p141
      %p143 = pneg %p142
      // Predicated region
      $region29: #{tpu_custom_call.1} parent=5 // pred_check
        _
      $region30: #{tpu_custom_call.1} parent=5 // pred_check_branch
        %145 = sbr.rel (%p142) target = $region32
      $region31: #{tpu_custom_call.1} parent=5 // pred_region
        %s146 = ssub.s32 %s12, 1
        %s147 = smul.u32 16, %s17
        %p148 = scmp.lt.s32.totalorder %s147, 31
        %s149 = scalar_select %p148, %s147, 31
        %s150 = smul.addr %s149, 8
        %s151 = scalar_lea.vmem %s0, %s150
        %p152 = pneg %p38
        %p153 = pneg %p35
        %p154 = pneg %p59
        %p155 = pneg %p56
        %p156 = pneg %p80
        %p157 = pneg %p77
        %p158 = pneg %p106
        %p159 = pneg %p103
        %s160 = sand.u32 %s93, 1
        %s161 = scalar_lea.sflag [#allocation3], %s160
        %s162 = sand.u32 %s93, 1
        %s163 = smul.addr %s162, 256
        %s164 = scalar_lea.vmem [#allocation2], %s163
        %s165 = smul.u32 16, %s17
        %p166 = scmp.lt.s32.totalorder %s165, 31
        %s167 = scalar_select %p166, %s165, 31
        %s168 = smul.addr %s167, 8
        %s169 = scalar_lea.vmem %s0, %s168
        %s170 = smul.u32 16, %s17
        %s171 = smul.u32 16, %s17
        %v173 = vld [vmem:[%s169] sm:$0xff]
        %v174 = vld [vmem:[%s169 + $0x8] sm:$0xff]
        %v175 = vld [vmem:[%s169 + $0x10] sm:$0xff]
        %v176 = vld [vmem:[%s169 + $0x18] sm:$0xff]
        %v177 = vld [vmem:[%s169 + $0x20] sm:$0xff]
        %v178 = vld [vmem:[%s169 + $0x28] sm:$0xff]
        %v179 = vld [vmem:[%s169 + $0x30] sm:$0xff]
        %v180 = vld [vmem:[%s169 + $0x38] sm:$0xff]
        %v181 = vld [vmem:[%s169 + $0x40] sm:$0xff]
        %v182 = vld [vmem:[%s169 + $0x48] sm:$0xff]
        %v183 = vld [vmem:[%s169 + $0x50] sm:$0xff]
        %v184 = vld [vmem:[%s169 + $0x58] sm:$0xff]
        %v185 = vld [vmem:[%s169 + $0x60] sm:$0xff]
        %v186 = vld [vmem:[%s169 + $0x68] sm:$0xff]
        %v187 = vld [vmem:[%s169 + $0x70] sm:$0xff]
        %v188 = vld [vmem:[%s169 + $0x78] sm:$0xff]
        %v189 = vpack.c.bf16 %v174, %v173
        %v190 = vpack.c.bf16 %v176, %v175
        %v191 = vpack.c.bf16 %v178, %v177
        %v192 = vpack.c.bf16 %v180, %v179
        %v193 = vpack.c.bf16 %v182, %v181
        %v194 = vpack.c.bf16 %v184, %v183
        %v195 = vpack.c.bf16 %v186, %v185
        %v196 = vpack.c.bf16 %v188, %v187
        %v197 = vld [vmem:[%s1] sm:$0xff]
        %v198 = vld [vmem:[%s1 + $0x8] sm:$0xff]
        %v199 = vld [vmem:[%s1 + $0x10] sm:$0xff]
        %v200 = vld [vmem:[%s1 + $0x18] sm:$0xff]
        %v201 = vld [vmem:[%s2] sm:$0x3]
        %v203 = vlaneseq
        %v204 = vshrl.u32 %v203, 7
        %v205 = vsub.s32 0, %v204
        %v206 = vrot.slane %v201, %v205
        %v207 = vlaneseq
        %v208 = vshrl.u32 %v207, 7
        %v209 = vsub.s32 1, %v208
        %v210 = vrot.slane %v201, %v209
        %v217 = vunpack.c.l.b16 %v197
        %v218 = vunpack.c.h.b16 %v197
        %v219 = vunpack.c.l.b16 %v198
        %v220 = vunpack.c.h.b16 %v198
        %v221 = vunpack.c.l.b16 %v199
        %v222 = vunpack.c.h.b16 %v199
        %v223 = vunpack.c.l.b16 %v200
        %v224 = vunpack.c.h.b16 %v200
        %v225 = vpack.c.b16 %v219, %v217
        %v226 = vpack.c.b16 %v220, %v218
        %v227 = vpack.c.b16 %v223, %v221
        %v228 = vpack.c.b16 %v224, %v222
        %vm233 = vcmask 261120
        %v235 = vsel %vm233, %v189, 0
        %v238 = vsel %vm233, %v190, 0
        %v241 = vsel %vm233, %v191, 0
        %v244 = vsel %vm233, %v192, 0
        %v247 = vsel %vm233, %v193, 0
        %v250 = vsel %vm233, %v194, 0
        %v253 = vsel %vm233, %v195, 0
        %v256 = vsel %vm233, %v196, 0
        %258 = vmatprep.subr.bf16.mxu0 %v226
        %259 = vmatpush1.bf16.msra.mxu0 %v225
        %260 = vmatprep.subr.bf16.mxu0 %v228
        %261 = vmatpush1.bf16.msra.mxu0 %v227
        %262 = vmatprep.subr.bf16.mxu0 0
        %263 = vmatpush1.bf16.msra.mxu0 0
        %264 = vmatprep.subr.bf16.mxu0 0
        %265 = vmatpush1.bf16.msra.mxu0 0
        %266 = vmatprep.subr.bf16.mxu0 0
        %267 = vmatpush1.bf16.msra.mxu0 0
        %268 = vmatprep.subr.bf16.mxu0 0
        %269 = vmatpush1.bf16.msra.mxu0 0
        %270 = vmatprep.subr.bf16.mxu0 0
        %271 = vmatpush1.bf16.msra.mxu0 0
        %272 = vmatprep.subr.bf16.mxu0 0
        %273 = vmatpush1.bf16.msra.mxu0 0
        %274 = vmatprep.subr.bf16.mxu0 0
        %275 = vmatpush1.bf16.msra.mxu0 0
        %276 = vmatprep.subr.bf16.mxu0 0
        %277 = vmatpush1.bf16.msra.mxu0 0
        %278 = vmatprep.subr.bf16.mxu0 0
        %279 = vmatpush1.bf16.msra.mxu0 0
        %280 = vmatprep.subr.bf16.mxu0 0
        %281 = vmatpush1.bf16.msra.mxu0 0
        %282 = vmatprep.subr.bf16.mxu0 0
        %283 = vmatpush1.bf16.msra.mxu0 0
        %284 = vmatprep.subr.bf16.mxu0 0
        %285 = vmatpush1.bf16.msra.mxu0 0
        %286 = vmatprep.subr.bf16.mxu0 0
        %287 = vmatpush1.bf16.msra.mxu0 0
        %288 = vmatprep.subr.bf16.mxu0 0
        %289 = vmatpush1.bf16.msra.mxu0 0
        %290 = vmatprep.mubr.bf16.mxu0 0
        %291 = vmatmul.mubr.bf16.gmra.mrb[0].mxu0 %v235
        %v292 = vpop.f32.mrb[0].mxu0
        %v293 = vadd.f32 %v206, %v292
        %v294 = vpop.f32.mrb[0].mxu0
        %v295 = vadd.f32 %v210, %v294
        %v296 = vpop.f32.mrb[0].mxu0
        %v297 = vadd.f32 %v206, %v296
        %v298 = vpop.f32.mrb[0].mxu0
        %v299 = vadd.f32 %v210, %v298
        %300 = vmatprep.mubr.bf16.mxu0 0
        %301 = vmatmul.mubr.bf16.gmra.mrb[0].mxu0 %v238
        %v302 = vpop.f32.mrb[0].mxu0
        %v303 = vadd.f32 %v206, %v302
        %v304 = vpop.f32.mrb[0].mxu0
        %v305 = vadd.f32 %v210, %v304
        %v306 = vpop.f32.mrb[0].mxu0
        %v307 = vadd.f32 %v206, %v306
        %v308 = vpop.f32.mrb[0].mxu0
        %v309 = vadd.f32 %v210, %v308
        %310 = vmatprep.mubr.bf16.mxu0 0
        %311 = vmatmul.mubr.bf16.gmra.mrb[0].mxu0 %v241
        %v312 = vpop.f32.mrb[0].mxu0
        %v313 = vadd.f32 %v206, %v312
        %v314 = vpop.f32.mrb[0].mxu0
        %v315 = vadd.f32 %v210, %v314
        %v316 = vpop.f32.mrb[0].mxu0
        %v317 = vadd.f32 %v206, %v316
        %v318 = vpop.f32.mrb[0].mxu0
        %v319 = vadd.f32 %v210, %v318
        %320 = vmatprep.mubr.bf16.mxu0 0
        %321 = vmatmul.mubr.bf16.gmra.mrb[0].mxu0 %v244
        %v322 = vpop.f32.mrb[0].mxu0
        %v323 = vadd.f32 %v206, %v322
        %v324 = vpop.f32.mrb[0].mxu0
        %v325 = vadd.f32 %v210, %v324
        %v326 = vpop.f32.mrb[0].mxu0
        %v327 = vadd.f32 %v206, %v326
        %v328 = vpop.f32.mrb[0].mxu0
        %v329 = vadd.f32 %v210, %v328
        %330 = vmatprep.mubr.bf16.mxu0 0
        %331 = vmatmul.mubr.bf16.gmra.mrb[0].mxu0 %v247
        %v332 = vpop.f32.mrb[0].mxu0
        %v333 = vadd.f32 %v206, %v332
        %v334 = vpop.f32.mrb[0].mxu0
        %v335 = vadd.f32 %v210, %v334
        %v336 = vpop.f32.mrb[0].mxu0
        %v337 = vadd.f32 %v206, %v336
        %v338 = vpop.f32.mrb[0].mxu0
        %v339 = vadd.f32 %v210, %v338
        %340 = vmatprep.mubr.bf16.mxu0 0
        %341 = vmatmul.mubr.bf16.gmra.mrb[0].mxu0 %v250
        %v342 = vpop.f32.mrb[0].mxu0
        %v343 = vadd.f32 %v206, %v342
        %v344 = vpop.f32.mrb[0].mxu0
        %v345 = vadd.f32 %v210, %v344
        %v346 = vpop.f32.mrb[0].mxu0
        %v347 = vadd.f32 %v206, %v346
        %v348 = vpop.f32.mrb[0].mxu0
        %v349 = vadd.f32 %v210, %v348
        %350 = vmatprep.mubr.bf16.mxu0 0
        %351 = vmatmul.mubr.bf16.gmra.mrb[0].mxu0 %v253
        %v352 = vpop.f32.mrb[0].mxu0
        %v353 = vadd.f32 %v206, %v352
        %v354 = vpop.f32.mrb[0].mxu0
        %v355 = vadd.f32 %v210, %v354
        %v356 = vpop.f32.mrb[0].mxu0
        %v357 = vadd.f32 %v206, %v356
        %v358 = vpop.f32.mrb[0].mxu0
        %v359 = vadd.f32 %v210, %v358
        %360 = vmatprep.mubr.bf16.mxu0 0
        %361 = vmatmul.mubr.bf16.gmra.mrb[0].mxu0 %v256
        %v362 = vpop.f32.mrb[0].mxu0
        %v363 = vadd.f32 %v206, %v362
        %v364 = vpop.f32.mrb[0].mxu0
        %v365 = vadd.f32 %v210, %v364
        %v366 = vpop.f32.mrb[0].mxu0
        %v367 = vadd.f32 %v206, %v366
        %v368 = vpop.f32.mrb[0].mxu0
        %v369 = vadd.f32 %v210, %v368
        %370 = vdwg.mxu0
        %v371 = vmax.f32 %v293, 0.0
        %v372 = vmax.f32 %v295, 0.0
        %v373 = vmax.f32 %v297, 0.0
        %v374 = vmax.f32 %v299, 0.0
        %v375 = vmax.f32 %v303, 0.0
        %v376 = vmax.f32 %v305, 0.0
        %v377 = vmax.f32 %v307, 0.0
        %v378 = vmax.f32 %v309, 0.0
        %v379 = vmax.f32 %v313, 0.0
        %v380 = vmax.f32 %v315, 0.0
        %v381 = vmax.f32 %v317, 0.0
        %v382 = vmax.f32 %v319, 0.0
        %v383 = vmax.f32 %v323, 0.0
        %v384 = vmax.f32 %v325, 0.0
        %v385 = vmax.f32 %v327, 0.0
        %v386 = vmax.f32 %v329, 0.0
        %v387 = vmax.f32 %v333, 0.0
        %v388 = vmax.f32 %v335, 0.0
        %v389 = vmax.f32 %v337, 0.0
        %v390 = vmax.f32 %v339, 0.0
        %v391 = vmax.f32 %v343, 0.0
        %v392 = vmax.f32 %v345, 0.0
        %v393 = vmax.f32 %v347, 0.0
        %v394 = vmax.f32 %v349, 0.0
        %v395 = vmax.f32 %v353, 0.0
        %v396 = vmax.f32 %v355, 0.0
        %v397 = vmax.f32 %v357, 0.0
        %v398 = vmax.f32 %v359, 0.0
        %v399 = vmax.f32 %v363, 0.0
        %v400 = vmax.f32 %v365, 0.0
        %v401 = vmax.f32 %v367, 0.0
        %v402 = vmax.f32 %v369, 0.0
        %403 = vst [vmem:[%s164] sm:$0xff] %v371
        %404 = vst [vmem:[%s164 + $0x8] sm:$0xff] %v372
        %405 = vst [vmem:[%s164 + $0x10] sm:$0xff] %v373
        %406 = vst [vmem:[%s164 + $0x18] sm:$0xff] %v374
        %407 = vst [vmem:[%s164 + $0x20] sm:$0xff] %v375
        %408 = vst [vmem:[%s164 + $0x28] sm:$0xff] %v376
        %409 = vst [vmem:[%s164 + $0x30] sm:$0xff] %v377
        %410 = vst [vmem:[%s164 + $0x38] sm:$0xff] %v378
        %411 = vst [vmem:[%s164 + $0x40] sm:$0xff] %v379
        %412 = vst [vmem:[%s164 + $0x48] sm:$0xff] %v380
        %413 = vst [vmem:[%s164 + $0x50] sm:$0xff] %v381
        %414 = vst [vmem:[%s164 + $0x58] sm:$0xff] %v382
        %415 = vst [vmem:[%s164 + $0x60] sm:$0xff] %v383
        %416 = vst [vmem:[%s164 + $0x68] sm:$0xff] %v384
        %417 = vst [vmem:[%s164 + $0x70] sm:$0xff] %v385
        %418 = vst [vmem:[%s164 + $0x78] sm:$0xff] %v386
        %419 = vst [vmem:[%s164 + $0x80] sm:$0xff] %v387
        %420 = vst [vmem:[%s164 + $0x88] sm:$0xff] %v388
        %421 = vst [vmem:[%s164 + $0x90] sm:$0xff] %v389
        %422 = vst [vmem:[%s164 + $0x98] sm:$0xff] %v390
        %423 = vst [vmem:[%s164 + $0xa0] sm:$0xff] %v391
        %424 = vst [vmem:[%s164 + $0xa8] sm:$0xff] %v392
        %425 = vst [vmem:[%s164 + $0xb0] sm:$0xff] %v393
        %426 = vst [vmem:[%s164 + $0xb8] sm:$0xff] %v394
        %427 = vst [vmem:[%s164 + $0xc0] sm:$0xff] %v395
        %428 = vst [vmem:[%s164 + $0xc8] sm:$0xff] %v396
        %429 = vst [vmem:[%s164 + $0xd0] sm:$0xff] %v397
        %430 = vst [vmem:[%s164 + $0xd8] sm:$0xff] %v398
        %431 = vst [vmem:[%s164 + $0xe0] sm:$0xff] %v399
        %432 = vst [vmem:[%s164 + $0xe8] sm:$0xff] %v400
        %433 = vst [vmem:[%s164 + $0xf0] sm:$0xff] %v401
        %434 = vst [vmem:[%s164 + $0xf8] sm:$0xff] %v402
        %s435 = sand.u32 %s93, 1
        %s436 = scalar_lea.sflag [#allocation3], %s435
        %s437 = sand.u32 %s93, 1
        %s438 = smul.addr %s437, 256
        %s439 = scalar_lea.vmem [#allocation2], %s438
        // Predicated region
        $region33: #{tpu_custom_call.1} parent=31 // pred_check
          %p440 = pneg %p103
        $region34: #{tpu_custom_call.1} parent=31 // pred_check_branch
          %442 = sbr.rel (%p440) target = $region36
        $region35: #{tpu_custom_call.1} parent=31 // pred_region
          %s443 = smul.u32 16, %s17
          %s445 = ssub.s32 4096, 4096
          %446 = vsyncadd %s436, %s445
          %s447 = smul.addr %s443, 2
          %s448 = smul.addr %s447, 128
          %s449 = scalar_lea.hbm %s3, %s448
          %s450 = sshll.u32 %s439, 4
          %s451 = int_to_ptr.vmem [resolvable:$true] %s450
          %456 = dma.vmem_to_hbm [thread:$0]  %s451, 4096, %s449, %s436, 256, 256, 16
        $region36: #{tpu_custom_call.1} parent=31 // pred_fallthru
          _
      $region32: #{tpu_custom_call.1} parent=5 // pred_fallthru
        _
      %p457 = scmp.le.s32.totalorder 2, %s12
      // Predicated region
      $region37: #{tpu_custom_call.1} parent=5 // pred_check
        %p458 = pneg %p457
      $region38: #{tpu_custom_call.1} parent=5 // pred_check_branch
        %460 = sbr.rel (%p458) target = $region40
      $region39: #{tpu_custom_call.1} parent=5 // pred_region
        %s461 = ssub.s32 %s12, 2
        // Predicated region
        $region41: #{tpu_custom_call.1} parent=39 // pred_check
          %p462 = pneg %p109
        $region42: #{tpu_custom_call.1} parent=39 // pred_check_branch
          %464 = sbr.rel (%p462) target = $region44
        $region43: #{tpu_custom_call.1} parent=39 // pred_region
          %s465 = sand.u32 %s94, 1
          %s466 = scalar_lea.sflag [#allocation3], %s465
          %s467 = sand.u32 %s94, 1
          %s468 = smul.addr %s467, 256
          %s469 = scalar_lea.vmem [#allocation2], %s468
          %470 = dma.done %s466, 4096
        $region44: #{tpu_custom_call.1} parent=39 // pred_fallthru
          _
      $region40: #{tpu_custom_call.1} parent=5 // pred_fallthru
        _
    $region6: #{tpu_custom_call.1} parent=1 // loop_footer
      %s16 = sadd.s32 1, %s12
    $region7: #{tpu_custom_call.1} parent=1 // loop_footer_branch
      %11 = sbr.rel target = $region3
    $region8: #{tpu_custom_call.1} parent=1 // loop_exit
      _
    %471 = vsyncpa [#allocation3], 1
    %s472 = scalar_lea.sflag [#allocation3], 1
    %473 = vsyncpa %s472, 1

</llo_original>
